<compile_context>
chip_gen: v7x
topology: tpu7x:2x2x1
jax: 0.10.0
libtpu: 0.0.40
codegen_flags: <defaults>
</compile_context>

<pallas_src>
import functools

import jax
import jax.numpy as jnp
from jax.experimental import pallas as pl
from jax.experimental.pallas import tpu as pltpu

BN_EPS = 1e-5
LANE = 128
MAX_BATCH_TILE = 2048            # sweepable; per-tile FLOPs are tiny at H=64
X_RESIDENT_BYTES = 2 * 1024 * 1024


def _round_up(x, m):
    return (x + m - 1) // m * m


def _vmem_limit_bytes(batch, tb, in_size, hidden, out_size, out_pad, x_resident):
    """Scoped-VMEM limit derived from the real buffer footprint (2x margin)."""
    def tile_bytes(r, c):
        return _round_up(r, 8) * _round_up(c, LANE) * 4
    x_bytes = 2 * (tile_bytes(batch, in_size) if x_resident
                   else tile_bytes(tb, in_size))
    est = (x_bytes
           + 2 * tile_bytes(tb, out_size)                         # output
           + 2 * (tile_bytes(in_size, hidden) + tile_bytes(hidden, hidden)
                  + tile_bytes(hidden, out_pad) + tile_bytes(4, hidden)
                  + tile_bytes(1, out_size))                      # weights
           + 4 * tile_bytes(2, hidden))                           # scratch
    return int(min(64 * 1024 * 1024, max(8 * 1024 * 1024, 2 * est)))


def _mlp_kernel(x_ref, w1_ref, w2_ref, w3_ref, bn_ref, b3_ref,
                o_ref, stats1_ref, stats2_ref, fold1_ref, fold2_ref,
                *, batch, batch_tile, out_size, x_resident):
    phase = pl.program_id(0)     # 0: BN1 stats, 1: BN2 stats, 2: final output
    tile = pl.program_id(1)      # batch-tile index
    inv_b = 1.0 / float(batch)
    need_mask = (batch % batch_tile) != 0            # static Python bool

    if need_mask:
        rows = jax.lax.broadcasted_iota(jnp.int32, (batch_tile, 1), 0)
        valid = (tile * batch_tile + rows) < batch

    def _mask(z):
        # Zero out padding rows of a partial last tile before accumulating.
        return jnp.where(valid, z, 0.0) if need_mask else z

    @pl.when(jnp.logical_and(phase == 0, tile == 0))
    def _init():
        stats1_ref[...] = jnp.zeros_like(stats1_ref)
        stats2_ref[...] = jnp.zeros_like(stats2_ref)

    if x_resident:
        row = pl.multiple_of(tile * batch_tile, 8)
        x = x_ref[pl.ds(row, batch_tile), :]          # slice of resident x
    else:
        x = x_ref[...]                                # (TB, in) auto-pipelined

    # fc1 -- bias intentionally omitted (cancelled by the BN batch mean).
    z1 = jnp.dot(x, w1_ref[...], preferred_element_type=jnp.float32)

    @pl.when(phase == 0)
    def _accum_bn1():
        z = _mask(z1)
        stats1_ref[...] += jnp.concatenate(
            [jnp.sum(z, axis=0, keepdims=True),
             jnp.sum(z * z, axis=0, keepdims=True)], axis=0)

    @pl.when(phase >= 1)
    def _phase12():
        # Fold BN1 into a single scale/shift once (stats1 complete after
        # phase 0); cached in VMEM scratch for the remaining tiles/phases.
        @pl.when(jnp.logical_and(phase == 1, tile == 0))
        def _fold_bn1():
            mu1 = stats1_ref[0:1, :] * inv_b
            var1 = jnp.maximum(stats1_ref[1:2, :] * inv_b - mu1 * mu1, 0.0)
            s1 = bn_ref[0:1, :] * jax.lax.rsqrt(var1 + BN_EPS)
            fold1_ref[...] = jnp.concatenate(
                [s1, bn_ref[1:2, :] - mu1 * s1], axis=0)

        h1 = jnp.maximum(z1 * fold1_ref[0:1, :] + fold1_ref[1:2, :], 0.0)
        # fc2 -- bias omitted (same cancellation argument).
        z2 = jnp.dot(h1, w2_ref[...], preferred_element_type=jnp.float32)

        @pl.when(phase == 1)
        def _accum_bn2():
            z = _mask(z2)
            stats2_ref[...] += jnp.concatenate(
                [jnp.sum(z, axis=0, keepdims=True),
                 jnp.sum(z * z, axis=0, keepdims=True)], axis=0)

        @pl.when(phase == 2)
        def _final():
            @pl.when(tile == 0)
            def _fold_bn2():
                mu2 = stats2_ref[0:1, :] * inv_b
                var2 = jnp.maximum(stats2_ref[1:2, :] * inv_b - mu2 * mu2, 0.0)
                s2 = bn_ref[2:3, :] * jax.lax.rsqrt(var2 + BN_EPS)
                fold2_ref[...] = jnp.concatenate(
                    [s2, bn_ref[3:4, :] - mu2 * s2], axis=0)

            h2 = jnp.maximum(z2 * fold2_ref[0:1, :] + fold2_ref[1:2, :], 0.0)
            z3 = jnp.dot(h2, w3_ref[...], preferred_element_type=jnp.float32)
            # Lane-padded MXU result sliced back to the true output width.
            o_ref[...] = z3[:, :out_size] + b3_ref[...]


def mlp_forward(x, params, *, max_batch_tile=MAX_BATCH_TILE):
    """x: (B, input_size) float32.  params: dict of weights (see init_params)."""
    batch, in_size = x.shape
    hidden = params["w1"].shape[1]
    out_size = params["w3"].shape[1]
    out_pad = _round_up(out_size, LANE)

    tb = min(batch, max_batch_tile)
    nb = pl.cdiv(batch, tb)

    # Keep x VMEM-resident (one DMA instead of one per phase) when it is small,
    # evenly tiled and 8-row aligned; otherwise auto-pipeline per batch tile.
    x_resident = (nb > 1 and batch % tb == 0 and tb % 8 == 0
                  and batch * in_size * 4 <= X_RESIDENT_BYTES)

    # Pack the per-feature BN vectors into one (4, H) tile; lane-pad fc3 so the
    # MXU sees a 128-wide N (the kernel slices the result back to out_size).
    bn = jnp.concatenate(
        [params["g1"], params["be1"], params["g2"], params["be2"]], axis=0)
    w3p = jnp.zeros((hidden, out_pad), jnp.float32).at[:, :out_size].set(
        params["w3"])

    if x_resident:
        x_spec = pl.BlockSpec((batch, in_size), lambda p, i: (0, 0))
    else:
        x_spec = pl.BlockSpec((tb, in_size), lambda p, i: (i, 0))

    kernel = functools.partial(_mlp_kernel, batch=batch, batch_tile=tb,
                               out_size=out_size, x_resident=x_resident)

    vmem_limit = _vmem_limit_bytes(batch, tb, in_size, hidden, out_size,
                                   out_pad, x_resident)

    flops = 2 * batch * (3 * in_size * hidden + 2 * hidden * hidden
                         + hidden * out_pad)
    x_reads = 1 if x_resident else 3
    bytes_accessed = 4 * (x_reads * batch * in_size + batch * out_size
                          + in_size * hidden + hidden * hidden
                          + hidden * out_pad + 4 * hidden + out_size)

    out = pl.pallas_call(
        kernel,
        out_shape=jax.ShapeDtypeStruct((batch, out_size), jnp.float32),
        grid_spec=pltpu.PrefetchScalarGridSpec(
            num_scalar_prefetch=0,
            # (phase, batch tile).  Both sequential: phase ordering and the
            # shared stats scratch are correctness-critical (do NOT mark
            # the tile axis "parallel").
            grid=(3, nb),
            in_specs=[
                x_spec,                                                # x
                pl.BlockSpec((in_size, hidden), lambda p, i: (0, 0)),  # w1
                pl.BlockSpec((hidden, hidden), lambda p, i: (0, 0)),   # w2
                pl.BlockSpec((hidden, out_pad), lambda p, i: (0, 0)),  # w3 (pad)
                pl.BlockSpec((4, hidden), lambda p, i: (0, 0)),        # BN pack
                pl.BlockSpec((1, out_size), lambda p, i: (0, 0)),      # b3
            ],
            # Phases 0/1 park on block 0 (never written -> never flushed);
            # only phase 2 walks the batch tiles, so only correct, unpadded
            # blocks ever hit HBM.
            out_specs=pl.BlockSpec(
                (tb, out_size), lambda p, i: (jnp.where(p == 2, i, 0), 0)),
            scratch_shapes=[pltpu.VMEM((2, hidden), jnp.float32),   # BN1 sum/ssq
                            pltpu.VMEM((2, hidden), jnp.float32),   # BN2 sum/ssq
                            pltpu.VMEM((2, hidden), jnp.float32),   # BN1 s/t
                            pltpu.VMEM((2, hidden), jnp.float32)],  # BN2 s/t
        ),
        compiler_params=pltpu.CompilerParams(
            dimension_semantics=("arbitrary", "arbitrary"),
            vmem_limit_bytes=vmem_limit,
        ),
        cost_estimate=pl.CostEstimate(
            flops=int(flops),
            transcendentals=int(2 * hidden),
            bytes_accessed=int(bytes_accessed),
        ),
    )(x, params["w1"], params["w2"], w3p, bn, params["b3"])

    return out


def init_params(key, input_size, output_size, inner_neurons=64):
    """Deterministic init mirroring the PyTorch module's __init__.

    nn.Linear weights are (out, in); we store them transposed as (in, out).
    xavier_normal_ on weights, normal_(0,1) on biases, BN gamma=1 / beta=0.
    b1/b2 are kept for fidelity with the PyTorch module, but the kernel does
    not consume them (they cancel under training-mode BatchNorm).
    """
    ks = jax.random.split(key, 6)

    def xavier_normal(k, fan_in, fan_out):
        std = jnp.sqrt(2.0 / (fan_in + fan_out))
        w = jax.random.normal(k, (fan_out, fan_in), dtype=jnp.float32) * std
        return w.T

    return {
        "w1": xavier_normal(ks[0], input_size, inner_neurons),
        "b1": jax.random.normal(ks[1], (1, inner_neurons), dtype=jnp.float32),
        "g1": jnp.ones((1, inner_neurons), jnp.float32),
        "be1": jnp.zeros((1, inner_neurons), jnp.float32),
        "w2": xavier_normal(ks[2], inner_neurons, inner_neurons),
        "b2": jax.random.normal(ks[3], (1, inner_neurons), dtype=jnp.float32),
        "g2": jnp.ones((1, inner_neurons), jnp.float32),
        "be2": jnp.zeros((1, inner_neurons), jnp.float32),
        "w3": xavier_normal(ks[4], inner_neurons, output_size),
        "b3": jax.random.normal(ks[5], (1, output_size), dtype=jnp.float32),
    }


def _reference(x, p):
    """Pure-JAX reference (training-mode BN), *including* b1/b2 to demonstrate
    numerically that dropping them in the kernel is a no-op."""
    def bn(h, g, b):
        mu = jnp.mean(h, axis=0, keepdims=True)
        var = jnp.mean((h - mu) ** 2, axis=0, keepdims=True)
        return (h - mu) / jnp.sqrt(var + BN_EPS) * g + b

    h = jax.nn.relu(bn(x @ p["w1"] + p["b1"], p["g1"], p["be1"]))
    h = jax.nn.relu(bn(h @ p["w2"] + p["b2"], p["g2"], p["be2"]))
    return h @ p["w3"] + p["b3"]


if __name__ == "__main__":
    key = jax.random.PRNGKey(0)
    k1, k2, k3, k4 = jax.random.split(key, 4)

    batch, input_size, output_size, inner = 8, 16, 8, 64
    params = init_params(k2, input_size, output_size, inner)

    # 1) Small case (single tile).
    x = jax.random.normal(k1, (batch, input_size), dtype=jnp.float32)
    out = mlp_forward(x, params)
    jax.block_until_ready(out)
    ref = _reference(x, params)
    assert out.shape == (batch, output_size)
    assert jnp.allclose(out, ref, atol=2e-4, rtol=2e-4), "mismatch (single tile)"

    # 2) Multi-tile with a partial last tile (exercises masked-stats path).
    xb = jax.random.normal(k3, (20, input_size), dtype=jnp.float32)
    outb = mlp_forward(xb, params, max_batch_tile=8)
    jax.block_until_ready(outb)
    assert jnp.allclose(outb, _reference(xb, params), atol=2e-4, rtol=2e-4), \
        "mismatch (partial tile)"

    # 3) Multi-tile, evenly divided (exercises VMEM-resident x path).
    xc = jax.random.normal(k4, (32, input_size), dtype=jnp.float32)
    outc = mlp_forward(xc, params, max_batch_tile=8)
    jax.block_until_ready(outc)
    assert jnp.allclose(outc, _reference(xc, params), atol=2e-4, rtol=2e-4), \
        "mismatch (resident x)"

    print("KERNEL_OK")
</pallas_src>

<mosaic_0001>
module attributes {stable_mosaic.version = 11 : i64} {
  func.func @_mlp_kernel(%arg0: i32, %arg1: i32, %arg2: memref<8x16xf32, #tpu.memory_space<vmem>>, %arg3: memref<16x64xf32, #tpu.memory_space<vmem>>, %arg4: memref<64x64xf32, #tpu.memory_space<vmem>>, %arg5: memref<64x128xf32, #tpu.memory_space<vmem>>, %arg6: memref<4x64xf32, #tpu.memory_space<vmem>>, %arg7: memref<1x8xf32, #tpu.memory_space<vmem>>, %arg8: memref<8x8xf32, #tpu.memory_space<vmem>>, %arg9: memref<2x64xf32, #tpu.memory_space<vmem>>, %arg10: memref<2x64xf32, #tpu.memory_space<vmem>>, %arg11: memref<2x64xf32, #tpu.memory_space<vmem>>, %arg12: memref<2x64xf32, #tpu.memory_space<vmem>>) attributes {dimension_semantics = [#tpu.dimension_semantics<arbitrary>, #tpu.dimension_semantics<arbitrary>], iteration_bounds = array<i64: 3, 1>, scalar_prefetch = 0 : i64, scratch_operands = 4 : i64, tpu.core_type = #tpu.core_type<tc>, window_params = [{transform_indices = @transform_0, window_bounds = array<i64: 8, 16>}, {pipeline_mode = #tpu.pipeline_mode<synchronous>, transform_indices = @transform_1, window_bounds = array<i64: 16, 64>}, {pipeline_mode = #tpu.pipeline_mode<synchronous>, transform_indices = @transform_2, window_bounds = array<i64: 64, 64>}, {pipeline_mode = #tpu.pipeline_mode<synchronous>, transform_indices = @transform_3, window_bounds = array<i64: 64, 128>}, {pipeline_mode = #tpu.pipeline_mode<synchronous>, transform_indices = @transform_4, window_bounds = array<i64: 4, 64>}, {pipeline_mode = #tpu.pipeline_mode<synchronous>, transform_indices = @transform_5, window_bounds = array<i64: 1, 8>}, {transform_indices = @transform_6, window_bounds = array<i64: 8, 8>}]} {
    %c0_i32 = arith.constant 0 : i32
    %0 = arith.cmpi eq, %arg0, %c0_i32 : i32
    %c0_i32_0 = arith.constant 0 : i32
    %1 = arith.cmpi eq, %arg1, %c0_i32_0 : i32
    %2 = arith.andi %0, %1 : i1
    %3 = arith.extui %2 : i1 to i32
    %c0_i32_1 = arith.constant 0 : i32
    %4 = arith.cmpi ne, %3, %c0_i32_1 : i32
    scf.if %4 {
      %cst_8 = arith.constant 0.000000e+00 : f32
      %14 = vector.broadcast %cst_8 : f32 to vector<2x64xf32>
      %c0_9 = arith.constant 0 : index
      %c0_10 = arith.constant 0 : index
      %15 = vector.load %arg9[%c0_9, %c0_10] : memref<2x64xf32, #tpu.memory_space<vmem>>, vector<2x64xf32>
      tpu.vector_store %arg9[%c0_9, %c0_10], %14 {strides = array<i32>} : memref<2x64xf32, #tpu.memory_space<vmem>>, vector<2x64xf32>,
      %cst_11 = arith.constant 0.000000e+00 : f32
      %16 = vector.broadcast %cst_11 : f32 to vector<2x64xf32>
      %c0_12 = arith.constant 0 : index
      %c0_13 = arith.constant 0 : index
      %17 = vector.load %arg10[%c0_12, %c0_13] : memref<2x64xf32, #tpu.memory_space<vmem>>, vector<2x64xf32>
      tpu.vector_store %arg10[%c0_12, %c0_13], %16 {strides = array<i32>} : memref<2x64xf32, #tpu.memory_space<vmem>>, vector<2x64xf32>,
    } else {
    }
    %c0 = arith.constant 0 : index
    %c0_2 = arith.constant 0 : index
    %5 = vector.load %arg2[%c0, %c0_2] : memref<8x16xf32, #tpu.memory_space<vmem>>, vector<8x16xf32>
    %c0_3 = arith.constant 0 : index
    %c0_4 = arith.constant 0 : index
    %6 = vector.load %arg3[%c0_3, %c0_4] : memref<16x64xf32, #tpu.memory_space<vmem>>, vector<16x64xf32>
    %cst = arith.constant dense<0.000000e+00> : vector<8x64xf32>
    %7 = tpu.matmul %5, %6, %cst {dimension_numbers = #tpu.dot_dimension_numbers<[1], [0], [0], [1], [0, 0, 1, 1], [], []>} : vector<8x16xf32>, vector<16x64xf32>, vector<8x64xf32> -> vector<8x64xf32>
    %c0_i32_5 = arith.constant 0 : i32
    %8 = arith.cmpi eq, %arg0, %c0_i32_5 : i32
    %9 = arith.extui %8 : i1 to i32
    %c0_i32_6 = arith.constant 0 : i32
    %10 = arith.cmpi ne, %9, %c0_i32_6 : i32
    scf.if %10 {
      %c0_8 = arith.constant 0 : index
      %c0_9 = arith.constant 0 : index
      %14 = vector.load %arg9[%c0_8, %c0_9] : memref<2x64xf32, #tpu.memory_space<vmem>>, vector<2x64xf32>
      %cst_10 = arith.constant dense<0.000000e+00> : vector<64xf32>
      %15 = vector.multi_reduction <add>, %7, %cst_10 [0] : vector<8x64xf32> to vector<64xf32>
      %16 = vector.shape_cast %15 : vector<64xf32> to vector<1x64xf32>
      %17 = arith.mulf %7, %7 : vector<8x64xf32>
      %cst_11 = arith.constant dense<0.000000e+00> : vector<64xf32>
      %18 = vector.multi_reduction <add>, %17, %cst_11 [0] : vector<8x64xf32> to vector<64xf32>
      %19 = vector.shape_cast %18 : vector<64xf32> to vector<1x64xf32>
      %20 = tpu.concatenate %16, %19 in 0 : vector<1x64xf32>, vector<1x64xf32> -> vector<2x64xf32>
      %21 = arith.addf %14, %20 : vector<2x64xf32>
      %c0_12 = arith.constant 0 : index
      %c0_13 = arith.constant 0 : index
      %22 = vector.load %arg9[%c0_12, %c0_13] : memref<2x64xf32, #tpu.memory_space<vmem>>, vector<2x64xf32>
      tpu.vector_store %arg9[%c0_12, %c0_13], %21 {strides = array<i32>} : memref<2x64xf32, #tpu.memory_space<vmem>>, vector<2x64xf32>,
    } else {
    }
    %c1_i32 = arith.constant 1 : i32
    %11 = arith.cmpi sge, %arg0, %c1_i32 : i32
    %12 = arith.extui %11 : i1 to i32
    %c0_i32_7 = arith.constant 0 : i32
    %13 = arith.cmpi ne, %12, %c0_i32_7 : i32
    scf.if %13 {
      %c1_i32_8 = arith.constant 1 : i32
      %14 = arith.cmpi eq, %arg0, %c1_i32_8 : i32
      %c0_i32_9 = arith.constant 0 : i32
      %15 = arith.cmpi eq, %arg1, %c0_i32_9 : i32
      %16 = arith.andi %14, %15 : i1
      %17 = arith.extui %16 : i1 to i32
      %c0_i32_10 = arith.constant 0 : i32
      %18 = arith.cmpi ne, %17, %c0_i32_10 : i32
      scf.if %18 {
        %c0_21 = arith.constant 0 : index
        %c0_22 = arith.constant 0 : index
        %35 = vector.load %arg9[%c0_21, %c0_22] : memref<2x64xf32, #tpu.memory_space<vmem>>, vector<1x64xf32>
        %cst_23 = arith.constant 1.250000e-01 : f32
        %36 = vector.broadcast %cst_23 : f32 to vector<1x64xf32>
        %37 = arith.mulf %35, %36 : vector<1x64xf32>
        %c1_24 = arith.constant 1 : index
        %c0_25 = arith.constant 0 : index
        %38 = vector.load %arg9[%c1_24, %c0_25] : memref<2x64xf32, #tpu.memory_space<vmem>>, vector<1x64xf32>
        %cst_26 = arith.constant 1.250000e-01 : f32
        %39 = vector.broadcast %cst_26 : f32 to vector<1x64xf32>
        %40 = arith.mulf %38, %39 : vector<1x64xf32>
        %41 = arith.mulf %37, %37 : vector<1x64xf32>
        %42 = arith.subf %40, %41 : vector<1x64xf32>
        %cst_27 = arith.constant 0.000000e+00 : f32
        %43 = vector.broadcast %cst_27 : f32 to vector<1x64xf32>
        %44 = arith.maximumf %42, %43 : vector<1x64xf32>
        %c0_28 = arith.constant 0 : index
        %c0_29 = arith.constant 0 : index
        %45 = vector.load %arg6[%c0_28, %c0_29] : memref<4x64xf32, #tpu.memory_space<vmem>>, vector<1x64xf32>
        %cst_30 = arith.constant 9.99999974E-6 : f32
        %46 = vector.broadcast %cst_30 : f32 to vector<1x64xf32>
        %47 = arith.addf %44, %46 : vector<1x64xf32>
        %48 = math.rsqrt %47 : vector<1x64xf32>
        %49 = arith.mulf %45, %48 : vector<1x64xf32>
        %c1_31 = arith.constant 1 : index
        %c0_32 = arith.constant 0 : index
        %50 = vector.load %arg6[%c1_31, %c0_32] : memref<4x64xf32, #tpu.memory_space<vmem>>, vector<1x64xf32>
        %51 = arith.mulf %37, %49 : vector<1x64xf32>
        %52 = arith.subf %50, %51 : vector<1x64xf32>
        %53 = tpu.concatenate %49, %52 in 0 : vector<1x64xf32>, vector<1x64xf32> -> vector<2x64xf32>
        %c0_33 = arith.constant 0 : index
        %c0_34 = arith.constant 0 : index
        %54 = vector.load %arg11[%c0_33, %c0_34] : memref<2x64xf32, #tpu.memory_space<vmem>>, vector<2x64xf32>
        tpu.vector_store %arg11[%c0_33, %c0_34], %53 {strides = array<i32>} : memref<2x64xf32, #tpu.memory_space<vmem>>, vector<2x64xf32>,
      } else {
      }
      %c0_11 = arith.constant 0 : index
      %c0_12 = arith.constant 0 : index
      %19 = vector.load %arg11[%c0_11, %c0_12] : memref<2x64xf32, #tpu.memory_space<vmem>>, vector<1x64xf32>
      %20 = vector.broadcast %19 : vector<1x64xf32> to vector<8x64xf32>
      %21 = arith.mulf %7, %20 : vector<8x64xf32>
      %c1 = arith.constant 1 : index
      %c0_13 = arith.constant 0 : index
      %22 = vector.load %arg11[%c1, %c0_13] : memref<2x64xf32, #tpu.memory_space<vmem>>, vector<1x64xf32>
      %23 = vector.broadcast %22 : vector<1x64xf32> to vector<8x64xf32>
      %24 = arith.addf %21, %23 : vector<8x64xf32>
      %cst_14 = arith.constant 0.000000e+00 : f32
      %25 = vector.broadcast %cst_14 : f32 to vector<8x64xf32>
      %26 = arith.maximumf %24, %25 : vector<8x64xf32>
      %c0_15 = arith.constant 0 : index
      %c0_16 = arith.constant 0 : index
      %27 = vector.load %arg4[%c0_15, %c0_16] : memref<64x64xf32, #tpu.memory_space<vmem>>, vector<64x64xf32>
      %cst_17 = arith.constant dense<0.000000e+00> : vector<8x64xf32>
      %28 = tpu.matmul %26, %27, %cst_17 {dimension_numbers = #tpu.dot_dimension_numbers<[1], [0], [0], [1], [0, 0, 1, 1], [], []>} : vector<8x64xf32>, vector<64x64xf32>, vector<8x64xf32> -> vector<8x64xf32>
      %c1_i32_18 = arith.constant 1 : i32
      %29 = arith.cmpi eq, %arg0, %c1_i32_18 : i32
      %30 = arith.extui %29 : i1 to i32
      %c0_i32_19 = arith.constant 0 : i32
      %31 = arith.cmpi ne, %30, %c0_i32_19 : i32
      scf.if %31 {
        %c0_21 = arith.constant 0 : index
        %c0_22 = arith.constant 0 : index
        %35 = vector.load %arg10[%c0_21, %c0_22] : memref<2x64xf32, #tpu.memory_space<vmem>>, vector<2x64xf32>
        %cst_23 = arith.constant dense<0.000000e+00> : vector<64xf32>
        %36 = vector.multi_reduction <add>, %28, %cst_23 [0] : vector<8x64xf32> to vector<64xf32>
        %37 = vector.shape_cast %36 : vector<64xf32> to vector<1x64xf32>
        %38 = arith.mulf %28, %28 : vector<8x64xf32>
        %cst_24 = arith.constant dense<0.000000e+00> : vector<64xf32>
        %39 = vector.multi_reduction <add>, %38, %cst_24 [0] : vector<8x64xf32> to vector<64xf32>
        %40 = vector.shape_cast %39 : vector<64xf32> to vector<1x64xf32>
        %41 = tpu.concatenate %37, %40 in 0 : vector<1x64xf32>, vector<1x64xf32> -> vector<2x64xf32>
        %42 = arith.addf %35, %41 : vector<2x64xf32>
        %c0_25 = arith.constant 0 : index
        %c0_26 = arith.constant 0 : index
        %43 = vector.load %arg10[%c0_25, %c0_26] : memref<2x64xf32, #tpu.memory_space<vmem>>, vector<2x64xf32>
        tpu.vector_store %arg10[%c0_25, %c0_26], %42 {strides = array<i32>} : memref<2x64xf32, #tpu.memory_space<vmem>>, vector<2x64xf32>,
      } else {
      }
      %c2_i32 = arith.constant 2 : i32
      %32 = arith.cmpi eq, %arg0, %c2_i32 : i32
      %33 = arith.extui %32 : i1 to i32
      %c0_i32_20 = arith.constant 0 : i32
      %34 = arith.cmpi ne, %33, %c0_i32_20 : i32
      scf.if %34 {
        %c0_i32_21 = arith.constant 0 : i32
        %35 = arith.cmpi eq, %arg1, %c0_i32_21 : i32
        %36 = arith.extui %35 : i1 to i32
        %c0_i32_22 = arith.constant 0 : i32
        %37 = arith.cmpi ne, %36, %c0_i32_22 : i32
        scf.if %37 {
          %c0_35 = arith.constant 0 : index
          %c0_36 = arith.constant 0 : index
          %53 = vector.load %arg10[%c0_35, %c0_36] : memref<2x64xf32, #tpu.memory_space<vmem>>, vector<1x64xf32>
          %cst_37 = arith.constant 1.250000e-01 : f32
          %54 = vector.broadcast %cst_37 : f32 to vector<1x64xf32>
          %55 = arith.mulf %53, %54 : vector<1x64xf32>
          %c1_38 = arith.constant 1 : index
          %c0_39 = arith.constant 0 : index
          %56 = vector.load %arg10[%c1_38, %c0_39] : memref<2x64xf32, #tpu.memory_space<vmem>>, vector<1x64xf32>
          %cst_40 = arith.constant 1.250000e-01 : f32
          %57 = vector.broadcast %cst_40 : f32 to vector<1x64xf32>
          %58 = arith.mulf %56, %57 : vector<1x64xf32>
          %59 = arith.mulf %55, %55 : vector<1x64xf32>
          %60 = arith.subf %58, %59 : vector<1x64xf32>
          %cst_41 = arith.constant 0.000000e+00 : f32
          %61 = vector.broadcast %cst_41 : f32 to vector<1x64xf32>
          %62 = arith.maximumf %60, %61 : vector<1x64xf32>
          %c2 = arith.constant 2 : index
          %c0_42 = arith.constant 0 : index
          %63 = vector.load %arg6[%c2, %c0_42] : memref<4x64xf32, #tpu.memory_space<vmem>>, vector<1x64xf32>
          %cst_43 = arith.constant 9.99999974E-6 : f32
          %64 = vector.broadcast %cst_43 : f32 to vector<1x64xf32>
          %65 = arith.addf %62, %64 : vector<1x64xf32>
          %66 = math.rsqrt %65 : vector<1x64xf32>
          %67 = arith.mulf %63, %66 : vector<1x64xf32>
          %c3 = arith.constant 3 : index
          %c0_44 = arith.constant 0 : index
          %68 = vector.load %arg6[%c3, %c0_44] : memref<4x64xf32, #tpu.memory_space<vmem>>, vector<1x64xf32>
          %69 = arith.mulf %55, %67 : vector<1x64xf32>
          %70 = arith.subf %68, %69 : vector<1x64xf32>
          %71 = tpu.concatenate %67, %70 in 0 : vector<1x64xf32>, vector<1x64xf32> -> vector<2x64xf32>
          %c0_45 = arith.constant 0 : index
          %c0_46 = arith.constant 0 : index
          %72 = vector.load %arg12[%c0_45, %c0_46] : memref<2x64xf32, #tpu.memory_space<vmem>>, vector<2x64xf32>
          tpu.vector_store %arg12[%c0_45, %c0_46], %71 {strides = array<i32>} : memref<2x64xf32, #tpu.memory_space<vmem>>, vector<2x64xf32>,
        } else {
        }
        %c0_23 = arith.constant 0 : index
        %c0_24 = arith.constant 0 : index
        %38 = vector.load %arg12[%c0_23, %c0_24] : memref<2x64xf32, #tpu.memory_space<vmem>>, vector<1x64xf32>
        %39 = vector.broadcast %38 : vector<1x64xf32> to vector<8x64xf32>
        %40 = arith.mulf %28, %39 : vector<8x64xf32>
        %c1_25 = arith.constant 1 : index
        %c0_26 = arith.constant 0 : index
        %41 = vector.load %arg12[%c1_25, %c0_26] : memref<2x64xf32, #tpu.memory_space<vmem>>, vector<1x64xf32>
        %42 = vector.broadcast %41 : vector<1x64xf32> to vector<8x64xf32>
        %43 = arith.addf %40, %42 : vector<8x64xf32>
        %cst_27 = arith.constant 0.000000e+00 : f32
        %44 = vector.broadcast %cst_27 : f32 to vector<8x64xf32>
        %45 = arith.maximumf %43, %44 : vector<8x64xf32>
        %c0_28 = arith.constant 0 : index
        %c0_29 = arith.constant 0 : index
        %46 = vector.load %arg5[%c0_28, %c0_29] : memref<64x128xf32, #tpu.memory_space<vmem>>, vector<64x128xf32>
        %cst_30 = arith.constant dense<0.000000e+00> : vector<8x128xf32>
        %47 = tpu.matmul %45, %46, %cst_30 {dimension_numbers = #tpu.dot_dimension_numbers<[1], [0], [0], [1], [0, 0, 1, 1], [], []>} : vector<8x64xf32>, vector<64x128xf32>, vector<8x128xf32> -> vector<8x128xf32>
        %48 = vector.extract_strided_slice %47 {offsets = [0, 0], sizes = [8, 8], strides = [1, 1]} : vector<8x128xf32> to vector<8x8xf32>
        %c0_31 = arith.constant 0 : index
        %c0_32 = arith.constant 0 : index
        %49 = vector.load %arg7[%c0_31, %c0_32] : memref<1x8xf32, #tpu.memory_space<vmem>>, vector<1x8xf32>
        %50 = vector.broadcast %49 : vector<1x8xf32> to vector<8x8xf32>
        %51 = arith.addf %48, %50 : vector<8x8xf32>
        %c0_33 = arith.constant 0 : index
        %c0_34 = arith.constant 0 : index
        %52 = vector.load %arg8[%c0_33, %c0_34] : memref<8x8xf32, #tpu.memory_space<vmem>>, vector<8x8xf32>
        tpu.vector_store %arg8[%c0_33, %c0_34], %51 {strides = array<i32>} : memref<8x8xf32, #tpu.memory_space<vmem>>, vector<8x8xf32>,
      } else {
      }
    } else {
    }
    return
  }
  func.func @transform_0(%arg0: i32, %arg1: i32) -> (i32, i32) {
    %c0_i32 = arith.constant 0 : i32
    %c0_i32_0 = arith.constant 0 : i32
    return %arg1, %c0_i32 : i32, i32
  }
  func.func @transform_1(%arg0: i32, %arg1: i32) -> (i32, i32) {
    %c0_i32 = arith.constant 0 : i32
    %c0_i32_0 = arith.constant 0 : i32
    %c0_i32_1 = arith.constant 0 : i32
    return %c0_i32, %c0_i32_0 : i32, i32
  }
  func.func @transform_2(%arg0: i32, %arg1: i32) -> (i32, i32) {
    %c0_i32 = arith.constant 0 : i32
    %c0_i32_0 = arith.constant 0 : i32
    %c0_i32_1 = arith.constant 0 : i32
    return %c0_i32, %c0_i32_0 : i32, i32
  }
  func.func @transform_3(%arg0: i32, %arg1: i32) -> (i32, i32) {
    %c0_i32 = arith.constant 0 : i32
    %c0_i32_0 = arith.constant 0 : i32
    %c0_i32_1 = arith.constant 0 : i32
    return %c0_i32, %c0_i32_0 : i32, i32
  }
  func.func @transform_4(%arg0: i32, %arg1: i32) -> (i32, i32) {
    %c0_i32 = arith.constant 0 : i32
    %c0_i32_0 = arith.constant 0 : i32
    %c0_i32_1 = arith.constant 0 : i32
    return %c0_i32, %c0_i32_0 : i32, i32
  }
  func.func @transform_5(%arg0: i32, %arg1: i32) -> (i32, i32) {
    %c0_i32 = arith.constant 0 : i32
    %c0_i32_0 = arith.constant 0 : i32
    %c0_i32_1 = arith.constant 0 : i32
    return %c0_i32, %c0_i32_0 : i32, i32
  }
  func.func @transform_6(%arg0: i32, %arg1: i32) -> (i32, i32) {
    %c2_i32 = arith.constant 2 : i32
    %0 = arith.cmpi eq, %arg0, %c2_i32 : i32
    %c0_i32 = arith.constant 0 : i32
    %1 = arith.select %0, %arg1, %c0_i32 : i32
    %c0_i32_0 = arith.constant 0 : i32
    %c0_i32_1 = arith.constant 0 : i32
    return %1, %c0_i32_0 : i32, i32
  }
}

</mosaic_0001>

<llo_original>
// kernel: tpu_custom_call.1
$region0: #{tpu_custom_call.1}
  #allocation0 [shape = 'u32[]', space=smem, size = 0x4, offset = 0x4, fixed_abs, tag = 'smem constant byte address 0x4 - core index']
  #allocation1 [shape = 'u32[144,128]{1,0:T(1,128)}', space=vmem, size = 0x12000, scoped, tag = 'internal scratch']
  #allocation2 [shape = 'f32[2,64]{1,0:T(2,128)}', space=vmem, size = 0x400, scoped, tag = 'scratch operand']
  #allocation3 [shape = 'f32[2,64]{1,0:T(2,128)}', space=vmem, size = 0x400, scoped, tag = 'scratch operand']
  #allocation4 [shape = 'f32[2,64]{1,0:T(2,128)}', space=vmem, size = 0x400, scoped, tag = 'scratch operand']
  #allocation5 [shape = 'f32[2,64]{1,0:T(2,128)}', space=vmem, size = 0x400, scoped, tag = 'scratch operand']
  %s0 = inlined_call_operand.hbm [shape: f32[8,16], index: 0, kind: input, shape index: {}]
  %s1 = inlined_call_operand.hbm [shape: f32[16,64], index: 1, kind: input, shape index: {}]
  %s2 = inlined_call_operand.hbm [shape: f32[64,64], index: 2, kind: input, shape index: {}]
  %s3 = inlined_call_operand.hbm [shape: f32[64,128], index: 3, kind: input, shape index: {}]
  %s4 = inlined_call_operand.vmem [shape: f32[4,64], index: 4, kind: input, shape index: {}]
  %s5 = inlined_call_operand.vmem [shape: f32[1,8], index: 5, kind: input, shape index: {}]
  %s6 = inlined_call_operand.hbm [shape: f32[8,8], index: 6, kind: output, shape index: {}]
  %s7 = sld [smem:[#allocation0]]
  $region101: #{tpu_custom_call.1} parent=0
    _
  %s9 = ssub.s32 1, %s7
  %s10 = scalar_select 0, %s9, %s7
  $region1: #{tpu_custom_call.1} parent=0
    #allocation6 [shape = 'u8[4096]{0}', space=vmem, size = 0x1000, scoped, tag = 'input window, operand 0, single buffered']
    #allocation7 [shape = 's32[2]{0}', space=sflag, size = 0x8, scoped, tag = 'scoped memory for tpu_custom_call.1']
    #allocation8 [shape = 's32[2]{0}', space=sflag, size = 0x8, scoped, tag = 'scoped memory for tpu_custom_call.1']
    #allocation9 [shape = 'u8[8192]{0}', space=vmem, size = 0x2000, scoped, tag = 'input window, operand 1, single buffered']
    #allocation10 [shape = 's32[1]{0}', space=sflag, size = 0x4, scoped, tag = 'scoped memory for tpu_custom_call.1']
    #allocation11 [shape = 'u8[32768]{0}', space=vmem, size = 0x8000, scoped, tag = 'input window, operand 2, single buffered']
    #allocation12 [shape = 'u8[32768]{0}', space=vmem, size = 0x8000, scoped, tag = 'input window, operand 3, single buffered']
    #allocation13 [shape = 's32[1]{0}', space=sflag, size = 0x4, scoped, tag = 'scoped memory for tpu_custom_call.1']
    #allocation14 [shape = 'u8[8192]{0}', space=vmem, size = 0x2000, scoped, tag = 'output window, operand 0']
    %11 = vsyncpa [#allocation7], 0
    %12 = vsyncpa [#allocation10], 0
    %13 = vsyncpa [#allocation13], 0
    %14 = vsyncpa [#allocation8], 0
    %s15 = scalar_lea.sflag [#allocation8], 1
    %16 = vsyncpa %s15, 0
    loop: start=0, step=1, limit=5
    $region2: #{tpu_custom_call.1} parent=1 // loop_pre_header
      _
    $region3: #{tpu_custom_call.1} parent=1 // loop_header
      %s18 = sphi 0, %s22
      %p19 = scmp.ge.s32.totalorder %s18, 5
      %s25 = sphi 0, %s37
      %s26 = sphi 0, %s33
      %s27 = sphi 0, %s25
      %s28 = sphi 0, %s26
      %s29 = sphi 0, %s27
      %s30 = sphi 0, %s28
      %s40 = sphi 0, %s42
      %s43 = sphi 0, %s40
      %s44 = sphi 0, %s43
      %s60 = sphi 0, %s44
      %s64 = sphi 0, %s64
      %s66 = sphi 0, %s64
      %s67 = sphi 0, %s66
      %s81 = sphi 0, %s67
      %s85 = sphi 0, %s85
      %s87 = sphi 0, %s85
      %s88 = sphi 0, %s87
      %s102 = sphi 0, %s88
      %s106 = sphi 0, %s106
      %s108 = sphi 0, %s106
      %s109 = sphi 0, %s108
      %s123 = sphi 0, %s109
      %s127 = sphi 0, %s127
      %s129 = sphi 0, %s127
      %s130 = sphi 0, %s129
      %s144 = sphi 0, %s130
      %s148 = sphi 0, %s148
      %s150 = sphi 0, %s148
      %s151 = sphi 0, %s150
      %s165 = sphi 0, %s151
      %s175 = sphi 0, %s177
      %s178 = sphi 0, %s175
      %s179 = sphi 0, %s178
      %s195 = sphi 0, %s179
    $region4: #{tpu_custom_call.1} parent=1 // loop_header_branch
      %21 = sbr.rel (%p19) target = $region8
    $region5: #{tpu_custom_call.1} parent=1 // loop_body
      %s23 = ssub.s32 %s18, 1
      %s24 = ssub.s32 %s18, 2
      %s31 = sadd.s32 1, %s26
      %p32 = scmp.ge.s32.totalorder %s31, 1
      %s33 = scalar_select %p32, 0, %s31
      %s34 = sadd.s32 1, %s25
      %s35 = scalar_select %p32, %s34, %s25
      %p36 = scmp.ge.s32.totalorder %s35, 3
      %s37 = scalar_select %p36, 0, %s35
      %s38 = ssub.s32 %s26, %s33
      %p39 = scmp.eq.s32.totalorder %s38, 0
      %s41 = sadd.s32 %s40, 1
      %s42 = scalar_select %p39, %s40, %s41
      %p45 = pneg %p39
      %p46 = scmp.eq.s32.totalorder %s18, 2
      %p47 = por %p45, %p46
      %p48 = scmp.ne.s32.totalorder %s40, %s43
      %p49 = scmp.eq.s32.totalorder %s18, 0
      %p50 = por %p48, %p49
      %p51 = scmp.ne.s32.totalorder %s40, %s43
      %p52 = scmp.eq.s32.totalorder %s23, 2
      %p53 = por %p51, %p52
      %p54 = scmp.ne.s32.totalorder %s43, %s44
      %p55 = scmp.eq.s32.totalorder %s23, 0
      %p56 = por %p54, %p55
      %p57 = scmp.ne.s32.totalorder %s43, %s44
      %p58 = scmp.eq.s32.totalorder %s24, 2
      %p59 = por %p57, %p58
      %p61 = scmp.ne.s32.totalorder %s44, %s60
      %p62 = scmp.eq.s32.totalorder %s24, 0
      %p63 = por %p61, %p62
      %s65 = sadd.s32 %s64, 1
      %p68 = scmp.eq.s32.totalorder %s18, 2
      %p69 = scmp.ne.s32.totalorder %s64, %s66
      %p70 = scmp.eq.s32.totalorder %s18, 0
      %p71 = por %p69, %p70
      %p72 = scmp.ne.s32.totalorder %s64, %s66
      %p73 = scmp.eq.s32.totalorder %s23, 2
      %p74 = por %p72, %p73
      %p75 = scmp.ne.s32.totalorder %s66, %s67
      %p76 = scmp.eq.s32.totalorder %s23, 0
      %p77 = por %p75, %p76
      %p78 = scmp.ne.s32.totalorder %s66, %s67
      %p79 = scmp.eq.s32.totalorder %s24, 2
      %p80 = por %p78, %p79
      %p82 = scmp.ne.s32.totalorder %s67, %s81
      %p83 = scmp.eq.s32.totalorder %s24, 0
      %p84 = por %p82, %p83
      %s86 = sadd.s32 %s85, 1
      %p89 = scmp.eq.s32.totalorder %s18, 2
      %p90 = scmp.ne.s32.totalorder %s85, %s87
      %p91 = scmp.eq.s32.totalorder %s18, 0
      %p92 = por %p90, %p91
      %p93 = scmp.ne.s32.totalorder %s85, %s87
      %p94 = scmp.eq.s32.totalorder %s23, 2
      %p95 = por %p93, %p94
      %p96 = scmp.ne.s32.totalorder %s87, %s88
      %p97 = scmp.eq.s32.totalorder %s23, 0
      %p98 = por %p96, %p97
      %p99 = scmp.ne.s32.totalorder %s87, %s88
      %p100 = scmp.eq.s32.totalorder %s24, 2
      %p101 = por %p99, %p100
      %p103 = scmp.ne.s32.totalorder %s88, %s102
      %p104 = scmp.eq.s32.totalorder %s24, 0
      %p105 = por %p103, %p104
      %s107 = sadd.s32 %s106, 1
      %p110 = scmp.eq.s32.totalorder %s18, 2
      %p111 = scmp.ne.s32.totalorder %s106, %s108
      %p112 = scmp.eq.s32.totalorder %s18, 0
      %p113 = por %p111, %p112
      %p114 = scmp.ne.s32.totalorder %s106, %s108
      %p115 = scmp.eq.s32.totalorder %s23, 2
      %p116 = por %p114, %p115
      %p117 = scmp.ne.s32.totalorder %s108, %s109
      %p118 = scmp.eq.s32.totalorder %s23, 0
      %p119 = por %p117, %p118
      %p120 = scmp.ne.s32.totalorder %s108, %s109
      %p121 = scmp.eq.s32.totalorder %s24, 2
      %p122 = por %p120, %p121
      %p124 = scmp.ne.s32.totalorder %s109, %s123
      %p125 = scmp.eq.s32.totalorder %s24, 0
      %p126 = por %p124, %p125
      %s128 = sadd.s32 %s127, 1
      %p131 = scmp.eq.s32.totalorder %s18, 2
      %p132 = scmp.ne.s32.totalorder %s127, %s129
      %p133 = scmp.eq.s32.totalorder %s18, 0
      %p134 = por %p132, %p133
      %p135 = scmp.ne.s32.totalorder %s127, %s129
      %p136 = scmp.eq.s32.totalorder %s23, 2
      %p137 = por %p135, %p136
      %p138 = scmp.ne.s32.totalorder %s129, %s130
      %p139 = scmp.eq.s32.totalorder %s23, 0
      %p140 = por %p138, %p139
      %p141 = scmp.ne.s32.totalorder %s129, %s130
      %p142 = scmp.eq.s32.totalorder %s24, 2
      %p143 = por %p141, %p142
      %p145 = scmp.ne.s32.totalorder %s130, %s144
      %p146 = scmp.eq.s32.totalorder %s24, 0
      %p147 = por %p145, %p146
      %s149 = sadd.s32 %s148, 1
      %p152 = scmp.eq.s32.totalorder %s18, 2
      %p153 = scmp.ne.s32.totalorder %s148, %s150
      %p154 = scmp.eq.s32.totalorder %s18, 0
      %p155 = por %p153, %p154
      %p156 = scmp.ne.s32.totalorder %s148, %s150
      %p157 = scmp.eq.s32.totalorder %s23, 2
      %p158 = por %p156, %p157
      %p159 = scmp.ne.s32.totalorder %s150, %s151
      %p160 = scmp.eq.s32.totalorder %s23, 0
      %p161 = por %p159, %p160
      %p162 = scmp.ne.s32.totalorder %s150, %s151
      %p163 = scmp.eq.s32.totalorder %s24, 2
      %p164 = por %p162, %p163
      %p166 = scmp.ne.s32.totalorder %s151, %s165
      %p167 = scmp.eq.s32.totalorder %s24, 0
      %p168 = por %p166, %p167
      %p169 = scmp.eq.s32.totalorder %s25, 2
      %s170 = scalar_select %p169, %s26, 0
      %p171 = scmp.eq.s32.totalorder %s37, 2
      %s172 = scalar_select %p171, %s33, 0
      %s173 = ssub.s32 %s170, %s172
      %p174 = scmp.eq.s32.totalorder %s173, 0
      %s176 = sadd.s32 %s175, 1
      %s177 = scalar_select %p174, %s175, %s176
      %p180 = pneg %p174
      %p181 = scmp.eq.s32.totalorder %s18, 2
      %p182 = por %p180, %p181
      %p183 = scmp.ne.s32.totalorder %s175, %s178
      %p184 = scmp.eq.s32.totalorder %s18, 0
      %p185 = por %p183, %p184
      %p186 = scmp.ne.s32.totalorder %s175, %s178
      %p187 = scmp.eq.s32.totalorder %s23, 2
      %p188 = por %p186, %p187
      %p189 = scmp.ne.s32.totalorder %s178, %s179
      %p190 = scmp.eq.s32.totalorder %s23, 0
      %p191 = por %p189, %p190
      %p192 = scmp.ne.s32.totalorder %s178, %s179
      %p193 = scmp.eq.s32.totalorder %s24, 2
      %p194 = por %p192, %p193
      %p196 = scmp.ne.s32.totalorder %s179, %s195
      %p197 = scmp.eq.s32.totalorder %s24, 0
      %p198 = por %p196, %p197
      %p199 = scmp.le.s32.totalorder 1, %s18
      %p200 = scmp.lt.s32.totalorder %s18, 4
      %p201 = pnand %p199, %p200
      %p202 = pneg %p201
      // Predicated region
      $region9: #{tpu_custom_call.1} parent=5 // pred_check
        _
      $region10: #{tpu_custom_call.1} parent=5 // pred_check_branch
        %204 = sbr.rel (%p201) target = $region12
      $region11: #{tpu_custom_call.1} parent=5 // pred_region
        %s205 = ssub.s32 %s18, 1
        // Predicated region
        $region13: #{tpu_custom_call.1} parent=11 // pred_check
          %p206 = pneg %p56
        $region14: #{tpu_custom_call.1} parent=11 // pred_check_branch
          %208 = sbr.rel (%p206) target = $region16
        $region15: #{tpu_custom_call.1} parent=11 // pred_region
          %s210 = ssub.s32 128, 128
          %211 = vsyncadd [#allocation7], %s210
          %s212 = smul.addr %s28, 128
          %s213 = scalar_lea.hbm %s0, %s212
          %s215 = sshll.u32 [#allocation6], 4
          %s216 = int_to_ptr.vmem [resolvable:$true] %s215
          %218 = dma.hbm_to_vmem [thread:$0]  %s213, 128, %s216, [#allocation7]
        $region16: #{tpu_custom_call.1} parent=11 // pred_fallthru
          _
        // Predicated region
        $region17: #{tpu_custom_call.1} parent=11 // pred_check
          %p219 = pneg %p77
        $region18: #{tpu_custom_call.1} parent=11 // pred_check_branch
          %221 = sbr.rel (%p219) target = $region20
        $region19: #{tpu_custom_call.1} parent=11 // pred_region
          %s223 = ssub.s32 256, 256
          %224 = vsyncadd [#allocation10], %s223
          %s225 = sshll.u32 [#allocation9], 4
          %s226 = int_to_ptr.vmem [resolvable:$true] %s225
          %231 = dma.hbm_to_vmem [thread:$0]  %s1, 256, %s226, [#allocation10], 128, 128, 8
        $region20: #{tpu_custom_call.1} parent=11 // pred_fallthru
          _
        // Predicated region
        $region21: #{tpu_custom_call.1} parent=11 // pred_check
          %p232 = pneg %p98
        $region22: #{tpu_custom_call.1} parent=11 // pred_check_branch
          %234 = sbr.rel (%p232) target = $region24
        $region23: #{tpu_custom_call.1} parent=11 // pred_region
          %s236 = ssub.s32 1024, 1024
          %237 = vsyncadd [#allocation10], %s236
          %s238 = sshll.u32 [#allocation11], 4
          %s239 = int_to_ptr.vmem [resolvable:$true] %s238
          %244 = dma.hbm_to_vmem [thread:$0]  %s2, 1024, %s239, [#allocation10], 128, 128, 8
        $region24: #{tpu_custom_call.1} parent=11 // pred_fallthru
          _
        // Predicated region
        $region25: #{tpu_custom_call.1} parent=11 // pred_check
          %p245 = pneg %p119
        $region26: #{tpu_custom_call.1} parent=11 // pred_check_branch
          %247 = sbr.rel (%p245) target = $region28
        $region27: #{tpu_custom_call.1} parent=11 // pred_region
          %s249 = ssub.s32 1024, 1024
          %250 = vsyncadd [#allocation13], %s249
          %s251 = sshll.u32 [#allocation12], 4
          %s252 = int_to_ptr.vmem [resolvable:$true] %s251
          %257 = dma.hbm_to_vmem [thread:$0]  %s3, 1024, %s252, [#allocation13], 128, 128, 8
        $region28: #{tpu_custom_call.1} parent=11 // pred_fallthru
          _
        // Predicated region
        $region29: #{tpu_custom_call.1} parent=11 // pred_check
          %p258 = pneg %p140
        $region30: #{tpu_custom_call.1} parent=11 // pred_check_branch
          %260 = sbr.rel (%p258) target = $region32
        $region31: #{tpu_custom_call.1} parent=11 // pred_region
          _
        $region32: #{tpu_custom_call.1} parent=11 // pred_fallthru
          _
        // Predicated region
        $region33: #{tpu_custom_call.1} parent=11 // pred_check
          %p261 = pneg %p161
        $region34: #{tpu_custom_call.1} parent=11 // pred_check_branch
          %263 = sbr.rel (%p261) target = $region36
        $region35: #{tpu_custom_call.1} parent=11 // pred_region
          _
        $region36: #{tpu_custom_call.1} parent=11 // pred_fallthru
          _
      $region12: #{tpu_custom_call.1} parent=5 // pred_fallthru
        _
      %p264 = scmp.lt.s32.totalorder %s18, 3
      // Predicated region
      $region37: #{tpu_custom_call.1} parent=5 // pred_check
        %p265 = pneg %p264
      $region38: #{tpu_custom_call.1} parent=5 // pred_check_branch
        %267 = sbr.rel (%p265) target = $region40
      $region39: #{tpu_custom_call.1} parent=5 // pred_region
        _
      $region40: #{tpu_custom_call.1} parent=5 // pred_fallthru
        _
      %p268 = scmp.le.s32.totalorder 1, %s18
      %p269 = scmp.lt.s32.totalorder %s18, 4
      %p270 = pnand %p268, %p269
      %p271 = pneg %p270
      // Predicated region
      $region41: #{tpu_custom_call.1} parent=5 // pred_check
        _
      $region42: #{tpu_custom_call.1} parent=5 // pred_check_branch
        %273 = sbr.rel (%p270) target = $region44
      $region43: #{tpu_custom_call.1} parent=5 // pred_region
        %s274 = ssub.s32 %s18, 1
        // Predicated region
        $region45: #{tpu_custom_call.1} parent=43 // pred_check
          %p275 = pneg %p56
        $region46: #{tpu_custom_call.1} parent=43 // pred_check_branch
          %277 = sbr.rel (%p275) target = $region48
        $region47: #{tpu_custom_call.1} parent=43 // pred_region
          %278 = dma.done [#allocation7], 128
        $region48: #{tpu_custom_call.1} parent=43 // pred_fallthru
          _
        // Predicated region
        $region49: #{tpu_custom_call.1} parent=43 // pred_check
          %p279 = pneg %p77
        $region50: #{tpu_custom_call.1} parent=43 // pred_check_branch
          %281 = sbr.rel (%p279) target = $region52
        $region51: #{tpu_custom_call.1} parent=43 // pred_region
          %282 = dma.done [#allocation10], 256
        $region52: #{tpu_custom_call.1} parent=43 // pred_fallthru
          _
        // Predicated region
        $region53: #{tpu_custom_call.1} parent=43 // pred_check
          %p283 = pneg %p98
        $region54: #{tpu_custom_call.1} parent=43 // pred_check_branch
          %285 = sbr.rel (%p283) target = $region56
        $region55: #{tpu_custom_call.1} parent=43 // pred_region
          %286 = dma.done [#allocation10], 1024
        $region56: #{tpu_custom_call.1} parent=43 // pred_fallthru
          _
        // Predicated region
        $region57: #{tpu_custom_call.1} parent=43 // pred_check
          %p287 = pneg %p119
        $region58: #{tpu_custom_call.1} parent=43 // pred_check_branch
          %289 = sbr.rel (%p287) target = $region60
        $region59: #{tpu_custom_call.1} parent=43 // pred_region
          %290 = dma.done [#allocation13], 1024
        $region60: #{tpu_custom_call.1} parent=43 // pred_fallthru
          _
        %p291 = pneg %p56
        %p292 = pneg %p53
        %p293 = pneg %p77
        %p294 = pneg %p74
        %p295 = pneg %p98
        %p296 = pneg %p95
        %p297 = pneg %p119
        %p298 = pneg %p116
        %p299 = pneg %p140
        %p300 = pneg %p137
        %p301 = pneg %p161
        %p302 = pneg %p158
        %p303 = pneg %p191
        %p304 = pneg %p188
        %s305 = sand.u32 %s178, 1
        %s306 = scalar_lea.sflag [#allocation8], %s305
        %s307 = sand.u32 %s178, 1
        %s308 = smul.addr %s307, 8
        %s309 = scalar_lea.vmem [#allocation14], %s308
        %p310 = scmp.eq.s32.totalorder %s27, 2
        %s311 = scalar_select %p310, %s28, 0
        %p312 = scmp.eq.s32.totalorder %s27, 0
        %p313 = scmp.eq.s32.totalorder %s28, 0
        %p314 = pnand %p312, %p313
        %p315 = pneg %p314
        // Predicated region
        $region61: #{tpu_custom_call.1} parent=43 // pred_check
          _
        $region62: #{tpu_custom_call.1} parent=43 // pred_check_branch
          %317 = sbr.rel (%p314) target = $region64
        $region63: #{tpu_custom_call.1} parent=43 // pred_region
          %vm318 = vcmask 517120
          %319 = vst.msk [vmem:[#allocation2] sm:$0x3] %vm318, 0.0
          %320 = vst.msk [vmem:[#allocation3] sm:$0x3] %vm318, 0.0
        $region64: #{tpu_custom_call.1} parent=43 // pred_fallthru
          _
        %v321 = vld [vmem:[#allocation6] sm:$0xff]
        %v322 = vld [vmem:[#allocation9] sm:$0xff]
        %v323 = vld [vmem:[#allocation9 + $0x8] sm:$0xff]
        %vm324 = vcmask 130048
        %v326 = vsel %vm324, %v321, 0
        %328 = vmatprep.subr.mxu0 0.0
        %329 = vmatpush1.msra.mxu0 %v322
        %330 = vmatprep.subr.mxu0 0.0
        %331 = vmatpush1.msra.mxu0 %v323
        %332 = vmatprep.subr.mxu0 0.0
        %333 = vmatpush1.msra.mxu0 0.0
        %334 = vmatprep.subr.mxu0 0.0
        %335 = vmatpush1.msra.mxu0 0.0
        %336 = vmatprep.subr.mxu0 0.0
        %337 = vmatpush1.msra.mxu0 0.0
        %338 = vmatprep.subr.mxu0 0.0
        %339 = vmatpush1.msra.mxu0 0.0
        %340 = vmatprep.subr.mxu0 0.0
        %341 = vmatpush1.msra.mxu0 0.0
        %342 = vmatprep.subr.mxu0 0.0
        %343 = vmatpush1.msra.mxu0 0.0
        %344 = vmatprep.subr.mxu0 0.0
        %345 = vmatpush1.msra.mxu0 0.0
        %346 = vmatprep.subr.mxu0 0.0
        %347 = vmatpush1.msra.mxu0 0.0
        %348 = vmatprep.subr.mxu0 0.0
        %349 = vmatpush1.msra.mxu0 0.0
        %350 = vmatprep.subr.mxu0 0.0
        %351 = vmatpush1.msra.mxu0 0.0
        %352 = vmatprep.subr.mxu0 0.0
        %353 = vmatpush1.msra.mxu0 0.0
        %354 = vmatprep.subr.mxu0 0.0
        %355 = vmatpush1.msra.mxu0 0.0
        %356 = vmatprep.subr.mxu0 0.0
        %357 = vmatpush1.msra.mxu0 0.0
        %358 = vmatprep.subr.mxu0 0.0
        %359 = vmatpush1.msra.mxu0 0.0
        %360 = vmatprep.subr.mxu0 0.0
        %361 = vmatpush1.msra.mxu0 0.0
        %362 = vmatprep.subr.mxu0 0.0
        %363 = vmatpush1.msra.mxu0 0.0
        %364 = vmatprep.subr.mxu0 0.0
        %365 = vmatpush1.msra.mxu0 0.0
        %366 = vmatprep.subr.mxu0 0.0
        %367 = vmatpush1.msra.mxu0 0.0
        %368 = vmatprep.subr.mxu0 0.0
        %369 = vmatpush1.msra.mxu0 0.0
        %370 = vmatprep.subr.mxu0 0.0
        %371 = vmatpush1.msra.mxu0 0.0
        %372 = vmatprep.subr.mxu0 0.0
        %373 = vmatpush1.msra.mxu0 0.0
        %374 = vmatprep.subr.mxu0 0.0
        %375 = vmatpush1.msra.mxu0 0.0
        %376 = vmatprep.subr.mxu0 0.0
        %377 = vmatpush1.msra.mxu0 0.0
        %378 = vmatprep.subr.mxu0 0.0
        %379 = vmatpush1.msra.mxu0 0.0
        %380 = vmatprep.subr.mxu0 0.0
        %381 = vmatpush1.msra.mxu0 0.0
        %382 = vmatprep.subr.mxu0 0.0
        %383 = vmatpush1.msra.mxu0 0.0
        %384 = vmatprep.subr.mxu0 0.0
        %385 = vmatpush1.msra.mxu0 0.0
        %386 = vmatprep.subr.mxu0 0.0
        %387 = vmatpush1.msra.mxu0 0.0
        %388 = vmatprep.subr.mxu0 0.0
        %389 = vmatpush1.msra.mxu0 0.0
        %390 = vmatprep.subr.mxu0 0.0
        %391 = vmatpush1.msra.mxu0 0.0
        %392 = vmatprep.mubr.f32.mxu0 0.0
        %393 = vmatmul.mubr.f32.gmra.mrb[0].mxu0 %v326
        %v394 = vpop.f32.mrb[0].mxu0
        %v395 = vadd.f32 0.0, %v394
        %v396 = vpop.f32.mrb[0].mxu0
        %397 = vdwg.mxu0
        // Predicated region
        $region65: #{tpu_custom_call.1} parent=43 // pred_check
          %p398 = pneg %p312
        $region66: #{tpu_custom_call.1} parent=43 // pred_check_branch
          %400 = sbr.rel (%p398) target = $region68
        $region67: #{tpu_custom_call.1} parent=43 // pred_region
          %v401 = vld [vmem:[#allocation2] sm:$0x3]
          %vm402 = vcmask 523264
          %v403 = vsel %vm402, %v395, 0.0
          %v404 = vrot.slane %v403, 4
          %v405 = vadd.f32 %v403, %v404
          %v406 = vrot.slane %v405, 2
          %v407 = vadd.f32 %v405, %v406
          %v408 = vrot.slane %v407, 1
          %v409 = vadd.f32 %v407, %v408
          %v410 = vmul.f32 %v395, %v395
          %v411 = vsel %vm402, %v410, 0.0
          %v412 = vrot.slane %v411, 4
          %v413 = vadd.f32 %v411, %v412
          %v414 = vrot.slane %v413, 2
          %v415 = vadd.f32 %v413, %v414
          %v416 = vrot.slane %v415, 1
          %v417 = vadd.f32 %v415, %v416
          %vm418 = vcmask 1040384
          %v419 = vsel %vm418, %v409, %v417
          %v420 = vadd.f32 %v401, %v419
          %vm421 = vcmask 517120
          %422 = vst.msk [vmem:[#allocation2] sm:$0x3] %vm421, %v420
        $region68: #{tpu_custom_call.1} parent=43 // pred_fallthru
          _
        %p423 = scmp.ge.s32.totalorder %s27, 1
        // Predicated region
        $region69: #{tpu_custom_call.1} parent=43 // pred_check
          %p424 = pneg %p423
        $region70: #{tpu_custom_call.1} parent=43 // pred_check_branch
          %426 = sbr.rel (%p424) target = $region72
        $region71: #{tpu_custom_call.1} parent=43 // pred_region
          %p427 = scmp.eq.s32.totalorder %s27, 1
          %p428 = pnand %p427, %p313
          %p429 = pneg %p428
          // Predicated region
          $region73: #{tpu_custom_call.1} parent=71 // pred_check
            _
          $region74: #{tpu_custom_call.1} parent=71 // pred_check_branch
            %431 = sbr.rel (%p428) target = $region76
          $region75: #{tpu_custom_call.1} parent=71 // pred_region
            %v432 = vld [vmem:[#allocation2] sm:$0x1]
            %v433 = vmul.f32 %v432, 0.125
            %v434 = vld [vmem:[#allocation2 + $0x1] sm:$0x1]
            %v435 = vmul.f32 %v434, 0.125
            %v436 = vmul.f32 %v433, %v433
            %v437 = vsub.f32 %v435, %v436
            %v438 = vmax.f32 %v437, 0.0
            %v439 = vld [vmem:[%s4] sm:$0x1]
            %v440 = vadd.f32 %v438, 1e-05
            %v441 = vrsqrt.pop %v440
            %v442 = vmul.f32 %v439, %v441
            %v443 = vld [vmem:[%s4 + $0x1] sm:$0x1]
            %v444 = vmul.f32 %v433, %v442
            %v445 = vsub.f32 %v443, %v444
            %v447 = vrot.slane %v445, 7
            %vm449 = vcmask 1040384
            %v450 = vsel %vm449, %v442, %v447
            %vm451 = vcmask 517120
            %452 = vst.msk [vmem:[#allocation4] sm:$0x3] %vm451, %v450
          $region76: #{tpu_custom_call.1} parent=71 // pred_fallthru
            _
          %v453 = vld [vmem:[#allocation4] sm:$0x1]
          %v454 = vlaneseq
          %v455 = vshrl.u32 %v454, 7
          %v456 = vsub.s32 0, %v455
          %v457 = vrot.slane %v453, %v456
          %v458 = vmul.f32 %v395, %v457
          %v459 = vld [vmem:[#allocation4 + $0x1] sm:$0x1]
          %v460 = vlaneseq
          %v461 = vshrl.u32 %v460, 7
          %v462 = vsub.s32 0, %v461
          %v463 = vrot.slane %v459, %v462
          %v464 = vadd.f32 %v458, %v463
          %v465 = vmax.f32 %v464, 0.0
          %v466 = vld [vmem:[#allocation11] sm:$0xff]
          %v467 = vld [vmem:[#allocation11 + $0x8] sm:$0xff]
          %v468 = vld [vmem:[#allocation11 + $0x10] sm:$0xff]
          %v469 = vld [vmem:[#allocation11 + $0x18] sm:$0xff]
          %v470 = vld [vmem:[#allocation11 + $0x20] sm:$0xff]
          %v471 = vld [vmem:[#allocation11 + $0x28] sm:$0xff]
          %v472 = vld [vmem:[#allocation11 + $0x30] sm:$0xff]
          %v473 = vld [vmem:[#allocation11 + $0x38] sm:$0xff]
          %vm474 = vcmask 523264
          %v476 = vsel %vm474, %v465, 0
          %478 = vmatprep.subr.mxu0 0.0
          %479 = vmatpush1.msra.mxu0 %v466
          %480 = vmatprep.subr.mxu0 0.0
          %481 = vmatpush1.msra.mxu0 %v467
          %482 = vmatprep.subr.mxu0 0.0
          %483 = vmatpush1.msra.mxu0 %v468
          %484 = vmatprep.subr.mxu0 0.0
          %485 = vmatpush1.msra.mxu0 %v469
          %486 = vmatprep.subr.mxu0 0.0
          %487 = vmatpush1.msra.mxu0 %v470
          %488 = vmatprep.subr.mxu0 0.0
          %489 = vmatpush1.msra.mxu0 %v471
          %490 = vmatprep.subr.mxu0 0.0
          %491 = vmatpush1.msra.mxu0 %v472
          %492 = vmatprep.subr.mxu0 0.0
          %493 = vmatpush1.msra.mxu0 %v473
          %494 = vmatprep.subr.mxu0 0.0
          %495 = vmatpush1.msra.mxu0 0.0
          %496 = vmatprep.subr.mxu0 0.0
          %497 = vmatpush1.msra.mxu0 0.0
          %498 = vmatprep.subr.mxu0 0.0
          %499 = vmatpush1.msra.mxu0 0.0
          %500 = vmatprep.subr.mxu0 0.0
          %501 = vmatpush1.msra.mxu0 0.0
          %502 = vmatprep.subr.mxu0 0.0
          %503 = vmatpush1.msra.mxu0 0.0
          %504 = vmatprep.subr.mxu0 0.0
          %505 = vmatpush1.msra.mxu0 0.0
          %506 = vmatprep.subr.mxu0 0.0
          %507 = vmatpush1.msra.mxu0 0.0
          %508 = vmatprep.subr.mxu0 0.0
          %509 = vmatpush1.msra.mxu0 0.0
          %510 = vmatprep.subr.mxu0 0.0
          %511 = vmatpush1.msra.mxu0 0.0
          %512 = vmatprep.subr.mxu0 0.0
          %513 = vmatpush1.msra.mxu0 0.0
          %514 = vmatprep.subr.mxu0 0.0
          %515 = vmatpush1.msra.mxu0 0.0
          %516 = vmatprep.subr.mxu0 0.0
          %517 = vmatpush1.msra.mxu0 0.0
          %518 = vmatprep.subr.mxu0 0.0
          %519 = vmatpush1.msra.mxu0 0.0
          %520 = vmatprep.subr.mxu0 0.0
          %521 = vmatpush1.msra.mxu0 0.0
          %522 = vmatprep.subr.mxu0 0.0
          %523 = vmatpush1.msra.mxu0 0.0
          %524 = vmatprep.subr.mxu0 0.0
          %525 = vmatpush1.msra.mxu0 0.0
          %526 = vmatprep.subr.mxu0 0.0
          %527 = vmatpush1.msra.mxu0 0.0
          %528 = vmatprep.subr.mxu0 0.0
          %529 = vmatpush1.msra.mxu0 0.0
          %530 = vmatprep.subr.mxu0 0.0
          %531 = vmatpush1.msra.mxu0 0.0
          %532 = vmatprep.subr.mxu0 0.0
          %533 = vmatpush1.msra.mxu0 0.0
          %534 = vmatprep.subr.mxu0 0.0
          %535 = vmatpush1.msra.mxu0 0.0
          %536 = vmatprep.subr.mxu0 0.0
          %537 = vmatpush1.msra.mxu0 0.0
          %538 = vmatprep.subr.mxu0 0.0
          %539 = vmatpush1.msra.mxu0 0.0
          %540 = vmatprep.subr.mxu0 0.0
          %541 = vmatpush1.msra.mxu0 0.0
          %542 = vmatprep.mubr.f32.mxu0 0.0
          %543 = vmatmul.mubr.f32.gmra.mrb[0].mxu0 %v476
          %v544 = vpop.f32.mrb[0].mxu0
          %v545 = vadd.f32 0.0, %v544
          %v546 = vpop.f32.mrb[0].mxu0
          %547 = vdwg.mxu0
          // Predicated region
          $region77: #{tpu_custom_call.1} parent=71 // pred_check
            %p548 = pneg %p427
          $region78: #{tpu_custom_call.1} parent=71 // pred_check_branch
            %550 = sbr.rel (%p548) target = $region80
          $region79: #{tpu_custom_call.1} parent=71 // pred_region
            %v551 = vld [vmem:[#allocation3] sm:$0x3]
            %v552 = vsel %vm474, %v545, 0.0
            %v553 = vrot.slane %v552, 4
            %v554 = vadd.f32 %v552, %v553
            %v555 = vrot.slane %v554, 2
            %v556 = vadd.f32 %v554, %v555
            %v557 = vrot.slane %v556, 1
            %v558 = vadd.f32 %v556, %v557
            %v559 = vmul.f32 %v545, %v545
            %v560 = vsel %vm474, %v559, 0.0
            %v561 = vrot.slane %v560, 4
            %v562 = vadd.f32 %v560, %v561
            %v563 = vrot.slane %v562, 2
            %v564 = vadd.f32 %v562, %v563
            %v565 = vrot.slane %v564, 1
            %v566 = vadd.f32 %v564, %v565
            %vm567 = vcmask 1040384
            %v568 = vsel %vm567, %v558, %v566
            %v569 = vadd.f32 %v551, %v568
            %vm570 = vcmask 517120
            %571 = vst.msk [vmem:[#allocation3] sm:$0x3] %vm570, %v569
          $region80: #{tpu_custom_call.1} parent=71 // pred_fallthru
            _
          %p572 = scmp.eq.s32.totalorder %s27, 2
          // Predicated region
          $region81: #{tpu_custom_call.1} parent=71 // pred_check
            %p573 = pneg %p572
          $region82: #{tpu_custom_call.1} parent=71 // pred_check_branch
            %575 = sbr.rel (%p573) target = $region84
          $region83: #{tpu_custom_call.1} parent=71 // pred_region
            // Predicated region
            $region85: #{tpu_custom_call.1} parent=83 // pred_check
              %p576 = pneg %p313
            $region86: #{tpu_custom_call.1} parent=83 // pred_check_branch
              %578 = sbr.rel (%p576) target = $region88
            $region87: #{tpu_custom_call.1} parent=83 // pred_region
              %v579 = vld [vmem:[#allocation3] sm:$0x1]
              %v580 = vmul.f32 %v579, 0.125
              %v581 = vld [vmem:[#allocation3 + $0x1] sm:$0x1]
              %v582 = vmul.f32 %v581, 0.125
              %v583 = vmul.f32 %v580, %v580
              %v584 = vsub.f32 %v582, %v583
              %v585 = vmax.f32 %v584, 0.0
              %v586 = vld [vmem:[%s4 + $0x2] sm:$0x1]
              %v587 = vadd.f32 %v585, 1e-05
              %v588 = vrsqrt.pop %v587
              %v589 = vmul.f32 %v586, %v588
              %v590 = vld [vmem:[%s4 + $0x3] sm:$0x1]
              %v591 = vmul.f32 %v580, %v589
              %v592 = vsub.f32 %v590, %v591
              %v594 = vrot.slane %v592, 7
              %vm596 = vcmask 1040384
              %v597 = vsel %vm596, %v589, %v594
              %vm598 = vcmask 517120
              %599 = vst.msk [vmem:[#allocation5] sm:$0x3] %vm598, %v597
            $region88: #{tpu_custom_call.1} parent=83 // pred_fallthru
              _
            %v600 = vld [vmem:[#allocation5] sm:$0x1]
            %v601 = vlaneseq
            %v602 = vshrl.u32 %v601, 7
            %v603 = vsub.s32 0, %v602
            %v604 = vrot.slane %v600, %v603
            %v605 = vmul.f32 %v545, %v604
            %v606 = vld [vmem:[#allocation5 + $0x1] sm:$0x1]
            %v607 = vlaneseq
            %v608 = vshrl.u32 %v607, 7
            %v609 = vsub.s32 0, %v608
            %v610 = vrot.slane %v606, %v609
            %v611 = vadd.f32 %v605, %v610
            %v612 = vmax.f32 %v611, 0.0
            %v613 = vld [vmem:[#allocation12] sm:$0xff]
            %v614 = vld [vmem:[#allocation12 + $0x8] sm:$0xff]
            %v615 = vld [vmem:[#allocation12 + $0x10] sm:$0xff]
            %v616 = vld [vmem:[#allocation12 + $0x18] sm:$0xff]
            %v617 = vld [vmem:[#allocation12 + $0x20] sm:$0xff]
            %v618 = vld [vmem:[#allocation12 + $0x28] sm:$0xff]
            %v619 = vld [vmem:[#allocation12 + $0x30] sm:$0xff]
            %v620 = vld [vmem:[#allocation12 + $0x38] sm:$0xff]
            %v622 = vsel %vm474, %v612, 0
            %624 = vmatprep.subr.mxu0 0.0
            %625 = vmatpush1.msra.mxu0 %v613
            %626 = vmatprep.subr.mxu0 0.0
            %627 = vmatpush1.msra.mxu0 %v614
            %628 = vmatprep.subr.mxu0 0.0
            %629 = vmatpush1.msra.mxu0 %v615
            %630 = vmatprep.subr.mxu0 0.0
            %631 = vmatpush1.msra.mxu0 %v616
            %632 = vmatprep.subr.mxu0 0.0
            %633 = vmatpush1.msra.mxu0 %v617
            %634 = vmatprep.subr.mxu0 0.0
            %635 = vmatpush1.msra.mxu0 %v618
            %636 = vmatprep.subr.mxu0 0.0
            %637 = vmatpush1.msra.mxu0 %v619
            %638 = vmatprep.subr.mxu0 0.0
            %639 = vmatpush1.msra.mxu0 %v620
            %640 = vmatprep.subr.mxu0 0.0
            %641 = vmatpush1.msra.mxu0 0.0
            %642 = vmatprep.subr.mxu0 0.0
            %643 = vmatpush1.msra.mxu0 0.0
            %644 = vmatprep.subr.mxu0 0.0
            %645 = vmatpush1.msra.mxu0 0.0
            %646 = vmatprep.subr.mxu0 0.0
            %647 = vmatpush1.msra.mxu0 0.0
            %648 = vmatprep.subr.mxu0 0.0
            %649 = vmatpush1.msra.mxu0 0.0
            %650 = vmatprep.subr.mxu0 0.0
            %651 = vmatpush1.msra.mxu0 0.0
            %652 = vmatprep.subr.mxu0 0.0
            %653 = vmatpush1.msra.mxu0 0.0
            %654 = vmatprep.subr.mxu0 0.0
            %655 = vmatpush1.msra.mxu0 0.0
            %656 = vmatprep.subr.mxu0 0.0
            %657 = vmatpush1.msra.mxu0 0.0
            %658 = vmatprep.subr.mxu0 0.0
            %659 = vmatpush1.msra.mxu0 0.0
            %660 = vmatprep.subr.mxu0 0.0
            %661 = vmatpush1.msra.mxu0 0.0
            %662 = vmatprep.subr.mxu0 0.0
            %663 = vmatpush1.msra.mxu0 0.0
            %664 = vmatprep.subr.mxu0 0.0
            %665 = vmatpush1.msra.mxu0 0.0
            %666 = vmatprep.subr.mxu0 0.0
            %667 = vmatpush1.msra.mxu0 0.0
            %668 = vmatprep.subr.mxu0 0.0
            %669 = vmatpush1.msra.mxu0 0.0
            %670 = vmatprep.subr.mxu0 0.0
            %671 = vmatpush1.msra.mxu0 0.0
            %672 = vmatprep.subr.mxu0 0.0
            %673 = vmatpush1.msra.mxu0 0.0
            %674 = vmatprep.subr.mxu0 0.0
            %675 = vmatpush1.msra.mxu0 0.0
            %676 = vmatprep.subr.mxu0 0.0
            %677 = vmatpush1.msra.mxu0 0.0
            %678 = vmatprep.subr.mxu0 0.0
            %679 = vmatpush1.msra.mxu0 0.0
            %680 = vmatprep.subr.mxu0 0.0
            %681 = vmatpush1.msra.mxu0 0.0
            %682 = vmatprep.subr.mxu0 0.0
            %683 = vmatpush1.msra.mxu0 0.0
            %684 = vmatprep.subr.mxu0 0.0
            %685 = vmatpush1.msra.mxu0 0.0
            %686 = vmatprep.subr.mxu0 0.0
            %687 = vmatpush1.msra.mxu0 0.0
            %688 = vmatprep.mubr.f32.mxu0 0.0
            %689 = vmatmul.mubr.f32.gmra.mrb[0].mxu0 %v622
            %v690 = vpop.f32.mrb[0].mxu0
            %v691 = vadd.f32 0.0, %v690
            %v692 = vpop.f32.mrb[0].mxu0
            %693 = vdwg.mxu0
            %v694 = vld [vmem:[%s5] sm:$0x1]
            %v696 = vlaneseq
            %v697 = vshrl.u32 %v696, 7
            %v698 = vsub.s32 0, %v697
            %v699 = vrot.slane %v694, %v698
            %v701 = vadd.f32 %v691, %v699
            %vm702 = vcmask 64512
            %703 = vst.msk [vmem:[%s309] sm:$0xff] %vm702, %v701
          $region84: #{tpu_custom_call.1} parent=71 // pred_fallthru
            _
        $region72: #{tpu_custom_call.1} parent=43 // pred_fallthru
          _
        %s704 = sand.u32 %s178, 1
        %s705 = scalar_lea.sflag [#allocation8], %s704
        %s706 = sand.u32 %s178, 1
        %s707 = smul.addr %s706, 8
        %s708 = scalar_lea.vmem [#allocation14], %s707
        // Predicated region
        $region89: #{tpu_custom_call.1} parent=43 // pred_check
          %p709 = pneg %p188
        $region90: #{tpu_custom_call.1} parent=43 // pred_check_branch
          %711 = sbr.rel (%p709) target = $region92
        $region91: #{tpu_custom_call.1} parent=43 // pred_region
          %p712 = scmp.eq.s32.totalorder %s27, 2
          %s713 = scalar_select %p712, %s28, 0
          %s715 = ssub.s32 128, 128
          %716 = vsyncadd %s705, %s715
          %s717 = smul.addr %s713, 128
          %s718 = scalar_lea.hbm %s6, %s717
          %s720 = sshll.u32 %s708, 4
          %s721 = int_to_ptr.vmem [resolvable:$true] %s720
          %723 = dma.vmem_to_hbm [thread:$0]  %s721, 128, %s718, %s705
        $region92: #{tpu_custom_call.1} parent=43 // pred_fallthru
          _
      $region44: #{tpu_custom_call.1} parent=5 // pred_fallthru
        _
      %p724 = scmp.le.s32.totalorder 2, %s18
      // Predicated region
      $region93: #{tpu_custom_call.1} parent=5 // pred_check
        %p725 = pneg %p724
      $region94: #{tpu_custom_call.1} parent=5 // pred_check_branch
        %727 = sbr.rel (%p725) target = $region96
      $region95: #{tpu_custom_call.1} parent=5 // pred_region
        %s728 = ssub.s32 %s18, 2
        // Predicated region
        $region97: #{tpu_custom_call.1} parent=95 // pred_check
          %p729 = pneg %p194
        $region98: #{tpu_custom_call.1} parent=95 // pred_check_branch
          %731 = sbr.rel (%p729) target = $region100
        $region99: #{tpu_custom_call.1} parent=95 // pred_region
          %s732 = sand.u32 %s179, 1
          %s733 = scalar_lea.sflag [#allocation8], %s732
          %s734 = sand.u32 %s179, 1
          %s735 = smul.addr %s734, 8
          %s736 = scalar_lea.vmem [#allocation14], %s735
          %737 = dma.done %s733, 128
        $region100: #{tpu_custom_call.1} parent=95 // pred_fallthru
          _
      $region96: #{tpu_custom_call.1} parent=5 // pred_fallthru
        _
    $region6: #{tpu_custom_call.1} parent=1 // loop_footer
      %s22 = sadd.s32 1, %s18
    $region7: #{tpu_custom_call.1} parent=1 // loop_footer_branch
      %17 = sbr.rel target = $region3
    $region8: #{tpu_custom_call.1} parent=1 // loop_exit
      _
    %738 = vsyncpa [#allocation7], 1
    %s739 = scalar_lea.sflag [#allocation7], 1
    %740 = vsyncpa %s739, 1
    %741 = vsyncpa [#allocation10], 1
    %742 = vsyncpa [#allocation13], 1
    %743 = vsyncpa [#allocation8], 1
    %s744 = scalar_lea.sflag [#allocation8], 1
    %745 = vsyncpa %s744, 1

</llo_original>
